<compile_context>
chip_gen: v5e
topology: v5e:2x2
jax: 0.10.0
libtpu: 0.0.40
codegen_flags: <defaults>
</compile_context>

<pallas_src>
import jax
import jax.numpy as jnp
from jax.experimental import pallas as pl
from jax.experimental.pallas import tpu as pltpu


# ---------------------------------------------------------------------------
# Kernels
# ---------------------------------------------------------------------------

def _softkl_binary_kernel(scores_ref, target_ref, out_ref):
    """Per-row CE assuming target is a {0,1} mask (algebraically simplified).

    CE_row = log(sum_j exp(s_j - m)) - log(sum_j exp(s_j - m) * t_j)
    -> one exp per element, two logs per row.  Exact for binary masks.
    """
    s = scores_ref[...].astype(jnp.float32)            # (TB, N)
    t = target_ref[...]                                 # raw narrow dtype
    m = jnp.max(s, axis=1, keepdims=True)                # unmasked row max (as PyTorch)
    e = jnp.exp(s - m)                                   # 1 EUP op / element
    z = jnp.sum(e, axis=1, keepdims=True)                # softmax denominator
    d = jnp.sum(jnp.where(t != 0, e, 0.0), axis=1, keepdims=True)
    out_ref[...] = jnp.log(z) - jnp.log(d)               # (TB, 1)


def _softkl_binary_lse_kernel(scores_ref, target_ref, out_ref, m_sc, z_sc, d_sc):
    """N-blocked binary path: online log-sum-exp over the class axis.

    grid = (batch_blocks, class_blocks); running per-row (m, z, d) live in VMEM
    scratch and are finalized on the last class block.  Keeps tiles small for
    vocab-scale N (required to fit v7x's 64 MiB VMEM).
    """
    k = pl.program_id(1)

    @pl.when(k == 0)
    def _():
        m_sc[...] = jnp.full_like(m_sc, -jnp.inf)
        z_sc[...] = jnp.zeros_like(z_sc)
        d_sc[...] = jnp.zeros_like(d_sc)

    s = scores_ref[...].astype(jnp.float32)              # (TB, TN)
    t = target_ref[...]
    m_prev = m_sc[...]
    m_new = jnp.maximum(m_prev, jnp.max(s, axis=1, keepdims=True))
    alpha = jnp.exp(m_prev - m_new)
    e = jnp.exp(s - m_new)
    z_sc[...] = alpha * z_sc[...] + jnp.sum(e, axis=1, keepdims=True)
    d_sc[...] = alpha * d_sc[...] + jnp.sum(jnp.where(t != 0, e, 0.0),
                                            axis=1, keepdims=True)
    m_sc[...] = m_new

    @pl.when(k == pl.num_programs(1) - 1)
    def _():
        # The max shift cancels: log(z*e^-m) - log(d*e^-m) = log z - log d.
        out_ref[...] = jnp.log(z_sc[...]) - jnp.log(d_sc[...])


def _softkl_general_kernel(scores_ref, target_ref, out_ref):
    """Exact per-element formulation (valid for soft / non-binary targets)."""
    s = scores_ref[...].astype(jnp.float32)
    t = target_ref[...].astype(jnp.float32)
    m = jnp.max(s, axis=1, keepdims=True)
    e = jnp.exp(s - m)
    em = e * t
    denom = jnp.sum(em, axis=1, keepdims=True)
    p = em * (1.0 / denom)                               # 1 divide / row (not / element)
    sup_logp = jnp.log(p + 1e-6 * (1.0 - t))
    logz = jnp.log(jnp.sum(e, axis=1, keepdims=True))
    scores_logp = (s - m) - logz                         # log_softmax(scores)
    out_ref[...] = jnp.sum(p * (sup_logp - scores_logp), axis=1, keepdims=True)


# ---------------------------------------------------------------------------
# Tiling / VMEM heuristics
# ---------------------------------------------------------------------------

def _vmem_budget_bytes():
    """Per-generation scoped-VMEM budget (leave headroom for the compiler)."""
    try:
        cap = int(pltpu.get_tpu_info().vmem_capacity_bytes)
    except Exception:
        cap = 64 * 1024 * 1024
    if cap >= 100 * 1024 * 1024:      # v5e / v6e: 128 MiB physical
        return 96 * 1024 * 1024
    if cap >= 60 * 1024 * 1024:       # v7x: 64 MiB per TensorCore
        return 44 * 1024 * 1024
    return max(16 * 1024 * 1024, int(cap * 0.6))


def _pick_row_tile(batch, tile_cols, scores_itemsize, target_itemsize,
                   vmem_budget, target_tile_bytes=4 << 20):
    """Row-tile size: ~4 MiB of f32 scores per block, bounded by the VMEM
    budget (double-buffered inputs + ~2 tile-sized f32 intermediates), with
    >=2 grid steps whenever the batch allows (megacore + pipelining)."""
    per_row_resident = tile_cols * (2 * (scores_itemsize + target_itemsize) + 8)
    rows_vmem = max(8, int(0.7 * vmem_budget) // max(per_row_resident, 1))
    rows = max(8, target_tile_bytes // max(tile_cols * 4, 1))
    rows = min(rows, rows_vmem, 16384)
    if batch >= 16:
        rows = min(rows, batch // 2)          # guarantee >=2 grid steps
    # Align to the packed-dtype sublane tile when possible (int8->32, bf16->16).
    align = 8
    if target_itemsize == 1 and rows >= 32:
        align = 32
    elif target_itemsize == 2 and rows >= 16:
        align = 16
    rows = max(8, (rows // align) * align)
    return min(rows, batch)


def _pick_col_tile(num_classes, target_cols=4096):
    """Largest multiple-of-128 divisor of N that is <= target_cols."""
    best = 128
    t = 128
    while t <= min(num_classes, target_cols):
        if num_classes % t == 0:
            best = t
        t += 128
    return best


# ---------------------------------------------------------------------------
# Wrapper
# ---------------------------------------------------------------------------

def softkl(scores, target, if_average=False, *, assume_binary_mask=True,
           block_rows=None, block_cols=None):
    """Pallas TPU implementation of softKL.forward(scores, target).

    assume_binary_mask=True uses the algebraically simplified fast path, which
    is exact ONLY for {0,1} masks; pass False for soft targets.
    """
    B, N = scores.shape
    assert target.shape == (B, N)

    s_item = jnp.dtype(scores.dtype).itemsize
    t_item = jnp.dtype(target.dtype).itemsize
    vmem_budget = _vmem_budget_bytes()

    # Decide whether to block over the class axis (binary fast path only).
    use_lse = False
    tn = N
    if assume_binary_mask and N % 128 == 0:
        if block_cols is not None:
            cand = max(128, (min(block_cols, N) // 128) * 128)
            if N % cand == 0 and cand < N:
                tn, use_lse = cand, True
        elif N >= 32768:                       # vocab-scale: keep tiles small
            cand = _pick_col_tile(N)
            if cand < N:
                tn, use_lse = cand, True
    # TODO(synk): N-blocked (two-pass) variant for the general soft-target path.

    tile_cols = tn if use_lse else N
    if block_rows is None:
        tb = _pick_row_tile(B, tile_cols, s_item, t_item, vmem_budget)
    else:
        tb = min(block_rows, B)
        if tb < B:                             # non-full blocks must be 8-aligned
            tb = max(8, (tb // 8) * 8)

    cost = pl.CostEstimate(
        flops=8 * B * N,
        transcendentals=B * N + 4 * B,
        bytes_accessed=B * N * (s_item + t_item) + B * 4,
    )

    # NOTE: output is (B,1) lane-sparse but only B*4 bytes total -> negligible.
    if use_lse:
        grid = (pl.cdiv(B, tb), N // tn)
        per_row = pl.pallas_call(
            _softkl_binary_lse_kernel,
            out_shape=jax.ShapeDtypeStruct((B, 1), jnp.float32),
            grid=grid,
            in_specs=[
                pl.BlockSpec((tb, tn), lambda i, k: (i, k)),
                pl.BlockSpec((tb, tn), lambda i, k: (i, k)),
            ],
            out_specs=pl.BlockSpec((tb, 1), lambda i, k: (i, 0)),
            scratch_shapes=[pltpu.VMEM((tb, 1), jnp.float32),
                            pltpu.VMEM((tb, 1), jnp.float32),
                            pltpu.VMEM((tb, 1), jnp.float32)],
            compiler_params=pltpu.CompilerParams(
                dimension_semantics=("parallel", "arbitrary"),
                vmem_limit_bytes=vmem_budget),
            cost_estimate=cost,
        )(scores, target)
    else:
        kernel = (_softkl_binary_kernel if assume_binary_mask
                  else _softkl_general_kernel)
        grid = (pl.cdiv(B, tb),)
        per_row = pl.pallas_call(
            kernel,
            out_shape=jax.ShapeDtypeStruct((B, 1), jnp.float32),
            grid=grid,
            in_specs=[
                pl.BlockSpec((tb, N), lambda i: (i, 0)),
                pl.BlockSpec((tb, N), lambda i: (i, 0)),
            ],
            out_specs=pl.BlockSpec((tb, 1), lambda i: (i, 0)),
            compiler_params=pltpu.CompilerParams(
                dimension_semantics=("parallel",),
                vmem_limit_bytes=vmem_budget),
            cost_estimate=cost,
        )(scores, target)

    ce = jnp.sum(per_row)
    if if_average:
        ce = ce / B
    return ce


# ---------------------------------------------------------------------------
# Pure-JAX reference (mirrors the PyTorch semantics exactly)
# ---------------------------------------------------------------------------

def _softkl_ref(scores, target, if_average=False):
    s = scores.astype(jnp.float32)
    t = target.astype(jnp.float32)
    row_max = jnp.max(s, axis=1, keepdims=True)
    e = jnp.exp(s - row_max)
    em = e * t
    p = em / jnp.sum(em, axis=1, keepdims=True)
    sup_logp = jnp.log(p + 1e-6 * (1.0 - t))
    scores_logp = (s - row_max) - jnp.log(jnp.sum(e, axis=1, keepdims=True))
    ce = jnp.sum(p * sup_logp - p * scores_logp)
    if if_average:
        ce = ce / scores.shape[0]
    return ce


if __name__ == "__main__":
    key = jax.random.PRNGKey(0)
    k1, k2, k3, k4, k5 = jax.random.split(key, 5)

    # Case 1: binary int8 mask (5 bytes/elem HBM), f32 scores, auto tiling
    #         (tb=32 -> grid of 2, both TCs busy on v7x).
    B, N = 64, 256
    scores = jax.random.normal(k1, (B, N), dtype=jnp.float32)
    mask_bool = jax.random.bernoulli(k2, p=0.5, shape=(B, N))
    mask_bool = mask_bool.at[:, 0].set(True)        # >=1 active class per row
    mask_i8 = mask_bool.astype(jnp.int8)

    ce = softkl(scores, mask_i8, if_average=False)
    jax.block_until_ready(ce)
    ce_ref = _softkl_ref(scores, mask_bool.astype(jnp.float32), if_average=False)
    assert jnp.allclose(ce, ce_ref, rtol=1e-4, atol=1e-4), (ce, ce_ref)

    # Case 2: ragged batch (partial last row tile), bf16 mask, if_average=True.
    B2, N2 = 40, 128
    scores2 = jax.random.normal(k3, (B2, N2), dtype=jnp.float32)
    mask2 = jax.random.bernoulli(k4, p=0.5, shape=(B2, N2)).astype(jnp.bfloat16)
    mask2 = mask2.at[:, 0].set(1.0)
    ce2 = softkl(scores2, mask2, if_average=True, block_rows=16)
    jax.block_until_ready(ce2)
    ce2_ref = _softkl_ref(scores2, mask2.astype(jnp.float32), if_average=True)
    assert jnp.allclose(ce2, ce2_ref, rtol=1e-4, atol=1e-4), (ce2, ce2_ref)

    # Case 3: soft (non-binary) targets -> general kernel, exact original math.
    soft_t = jax.random.uniform(k2, (B, N), dtype=jnp.float32, minval=0.05, maxval=1.0)
    ce3 = softkl(scores, soft_t, if_average=False, assume_binary_mask=False)
    jax.block_until_ready(ce3)
    ce3_ref = _softkl_ref(scores, soft_t, if_average=False)
    assert jnp.allclose(ce3, ce3_ref, rtol=1e-4, atol=1e-4), (ce3, ce3_ref)

    # Case 4: bf16 scores (33% fewer HBM bytes) + int8 mask + forced N-blocked
    #         online-LSE path (block_cols=128 -> grid (2, 2)).
    B4, N4 = 32, 256
    scores4 = jax.random.normal(k5, (B4, N4), dtype=jnp.float32).astype(jnp.bfloat16)
    mask4_bool = jax.random.bernoulli(k1, p=0.5, shape=(B4, N4))
    mask4_bool = mask4_bool.at[:, 0].set(True)
    mask4 = mask4_bool.astype(jnp.int8)
    ce4 = softkl(scores4, mask4, if_average=False, block_cols=128)
    jax.block_until_ready(ce4)
    ce4_ref = _softkl_ref(scores4.astype(jnp.float32),
                          mask4_bool.astype(jnp.float32), if_average=False)
    assert jnp.allclose(ce4, ce4_ref, rtol=1e-4, atol=1e-4), (ce4, ce4_ref)

    print("KERNEL_OK")
</pallas_src>

<mosaic_0001>
module attributes {stable_mosaic.version = 11 : i64} {
  func.func @_softkl_binary_kernel(%arg0: i32, %arg1: memref<32x256xf32, #tpu.memory_space<vmem>>, %arg2: memref<32x256xi8, #tpu.memory_space<vmem>>, %arg3: memref<32x1xf32, #tpu.memory_space<vmem>>) attributes {dimension_semantics = [#tpu.dimension_semantics<parallel>], iteration_bounds = array<i64: 2>, scalar_prefetch = 0 : i64, scratch_operands = 0 : i64, tpu.core_type = #tpu.core_type<tc>, window_params = [{transform_indices = @transform_0, window_bounds = array<i64: 32, 256>}, {transform_indices = @transform_1, window_bounds = array<i64: 32, 256>}, {transform_indices = @transform_2, window_bounds = array<i64: 32, 1>}]} {
    %c0 = arith.constant 0 : index
    %c0_0 = arith.constant 0 : index
    %0 = vector.load %arg1[%c0, %c0_0] : memref<32x256xf32, #tpu.memory_space<vmem>>, vector<32x256xf32>
    %c0_1 = arith.constant 0 : index
    %c0_2 = arith.constant 0 : index
    %1 = vector.load %arg2[%c0_1, %c0_2] : memref<32x256xi8, #tpu.memory_space<vmem>>, vector<32x256xi8>
    %cst = arith.constant dense<0xFF800000> : vector<32xf32>
    %2 = vector.multi_reduction <maximumf>, %0, %cst [1] : vector<32x256xf32> to vector<32xf32>
    %3 = vector.shape_cast %2 : vector<32xf32> to vector<32x1xf32>
    %4 = vector.broadcast %3 : vector<32x1xf32> to vector<32x256xf32>
    %5 = arith.subf %0, %4 : vector<32x256xf32>
    %6 = math.exp %5 : vector<32x256xf32>
    %cst_3 = arith.constant dense<0.000000e+00> : vector<32xf32>
    %7 = vector.multi_reduction <add>, %6, %cst_3 [1] : vector<32x256xf32> to vector<32xf32>
    %8 = vector.shape_cast %7 : vector<32xf32> to vector<32x1xf32>
    %c0_i8 = arith.constant 0 : i8
    %9 = vector.broadcast %c0_i8 : i8 to vector<32x256xi8>
    %10 = arith.cmpi ne, %1, %9 : vector<32x256xi8>
    %cst_4 = arith.constant 0.000000e+00 : f32
    %11 = vector.broadcast %cst_4 : f32 to vector<32x256xf32>
    %12 = arith.select %10, %6, %11 : vector<32x256xi1>, vector<32x256xf32>
    %cst_5 = arith.constant dense<0.000000e+00> : vector<32xf32>
    %13 = vector.multi_reduction <add>, %12, %cst_5 [1] : vector<32x256xf32> to vector<32xf32>
    %14 = vector.shape_cast %13 : vector<32xf32> to vector<32x1xf32>
    %15 = math.log %8 : vector<32x1xf32>
    %16 = math.log %14 : vector<32x1xf32>
    %17 = arith.subf %15, %16 : vector<32x1xf32>
    %c0_6 = arith.constant 0 : index
    %c0_7 = arith.constant 0 : index
    %18 = vector.load %arg3[%c0_6, %c0_7] : memref<32x1xf32, #tpu.memory_space<vmem>>, vector<32x1xf32>
    tpu.vector_store %arg3[%c0_6, %c0_7], %17 {strides = array<i32>} : memref<32x1xf32, #tpu.memory_space<vmem>>, vector<32x1xf32>,
    return
  }
  func.func @transform_0(%arg0: i32) -> (i32, i32) {
    %c0_i32 = arith.constant 0 : i32
    %c0_i32_0 = arith.constant 0 : i32
    return %arg0, %c0_i32 : i32, i32
  }
  func.func @transform_1(%arg0: i32) -> (i32, i32) {
    %c0_i32 = arith.constant 0 : i32
    %c0_i32_0 = arith.constant 0 : i32
    return %arg0, %c0_i32 : i32, i32
  }
  func.func @transform_2(%arg0: i32) -> (i32, i32) {
    %c0_i32 = arith.constant 0 : i32
    %c0_i32_0 = arith.constant 0 : i32
    return %arg0, %c0_i32 : i32, i32
  }
}

</mosaic_0001>

<llo_original>
// kernel: tpu_custom_call.1
$region0: #{tpu_custom_call.1}
  #allocation0 [shape = 'u32[]', space=smem, size = 0x4, offset = 0x4, fixed_abs, tag = 'smem constant byte address 0x4 - core index']
  #allocation1 [shape = 'u32[72,128]{1,0:T(1,128)}', space=vmem, size = 0x9000, scoped, tag = 'internal scratch']
  %s0 = inlined_call_operand.hbm [shape: f32[64,256], index: 0, kind: input, shape index: {}]
  %s1 = inlined_call_operand.hbm [shape: s8[64,256], index: 1, kind: input, shape index: {}]
  %s2 = inlined_call_operand.vmem [shape: f32[64,1], index: 2, kind: output, shape index: {}]
  %s3 = sld [smem:[#allocation0]]
  $region49: #{tpu_custom_call.1} parent=0
    _
  %s5 = ssub.s32 1, %s3
  %s6 = scalar_select 0, %s5, %s3
  $region1: #{tpu_custom_call.1} parent=0
    #allocation2 [shape = 'u8[65536]{0}', space=vmem, size = 0x10000, scoped, tag = 'input window, operand 0']
    #allocation3 [shape = 's32[2]{0}', space=sflag, size = 0x8, scoped, tag = 'scoped memory for tpu_custom_call.1']
    #allocation4 [shape = 'u8[16384]{0}', space=vmem, size = 0x4000, scoped, tag = 'input window, operand 1']
    #allocation5 [shape = 's32[2]{0}', space=sflag, size = 0x8, scoped, tag = 'scoped memory for tpu_custom_call.1']
    %7 = vsyncpa [#allocation3], 0
    %s8 = scalar_lea.sflag [#allocation3], 1
    %9 = vsyncpa %s8, 0
    %10 = vsyncpa [#allocation5], 0
    %s11 = scalar_lea.sflag [#allocation5], 1
    %12 = vsyncpa %s11, 0
    loop: start=0, step=1, limit=4
    $region2: #{tpu_custom_call.1} parent=1 // loop_pre_header
      _
    $region3: #{tpu_custom_call.1} parent=1 // loop_header
      %s14 = sphi 0, %s18
      %p15 = scmp.ge.s32.totalorder %s14, 4
      %s24 = sphi 0, %s26
      %s27 = sphi 0, %s24
      %s28 = sphi 0, %s27
      %s44 = sphi 0, %s28
      %s50 = sphi 0, %s52
      %s53 = sphi 0, %s50
      %s54 = sphi 0, %s53
      %s70 = sphi 0, %s54
      %s76 = sphi 0, %s78
      %s79 = sphi 0, %s76
      %s80 = sphi 0, %s79
      %s96 = sphi 0, %s80
    $region4: #{tpu_custom_call.1} parent=1 // loop_header_branch
      %17 = sbr.rel (%p15) target = $region8
    $region5: #{tpu_custom_call.1} parent=1 // loop_body
      %s19 = ssub.s32 %s14, 1
      %s20 = ssub.s32 %s14, 2
      %s21 = sadd.s32 %s14, 1
      %s22 = ssub.s32 %s14, %s21
      %p23 = scmp.eq.s32.totalorder %s22, 0
      %s25 = sadd.s32 %s24, 1
      %s26 = scalar_select %p23, %s24, %s25
      %p29 = pneg %p23
      %p30 = scmp.eq.s32.totalorder %s14, 1
      %p31 = por %p29, %p30
      %p32 = scmp.ne.s32.totalorder %s24, %s27
      %p33 = scmp.eq.s32.totalorder %s14, 0
      %p34 = por %p32, %p33
      %p35 = scmp.ne.s32.totalorder %s24, %s27
      %p36 = scmp.eq.s32.totalorder %s19, 1
      %p37 = por %p35, %p36
      %p38 = scmp.ne.s32.totalorder %s27, %s28
      %p39 = scmp.eq.s32.totalorder %s19, 0
      %p40 = por %p38, %p39
      %p41 = scmp.ne.s32.totalorder %s27, %s28
      %p42 = scmp.eq.s32.totalorder %s20, 1
      %p43 = por %p41, %p42
      %p45 = scmp.ne.s32.totalorder %s28, %s44
      %p46 = scmp.eq.s32.totalorder %s20, 0
      %p47 = por %p45, %p46
      %s48 = ssub.s32 %s14, %s21
      %p49 = scmp.eq.s32.totalorder %s48, 0
      %s51 = sadd.s32 %s50, 1
      %s52 = scalar_select %p49, %s50, %s51
      %p55 = pneg %p49
      %p56 = scmp.eq.s32.totalorder %s14, 1
      %p57 = por %p55, %p56
      %p58 = scmp.ne.s32.totalorder %s50, %s53
      %p59 = scmp.eq.s32.totalorder %s14, 0
      %p60 = por %p58, %p59
      %p61 = scmp.ne.s32.totalorder %s50, %s53
      %p62 = scmp.eq.s32.totalorder %s19, 1
      %p63 = por %p61, %p62
      %p64 = scmp.ne.s32.totalorder %s53, %s54
      %p65 = scmp.eq.s32.totalorder %s19, 0
      %p66 = por %p64, %p65
      %p67 = scmp.ne.s32.totalorder %s53, %s54
      %p68 = scmp.eq.s32.totalorder %s20, 1
      %p69 = por %p67, %p68
      %p71 = scmp.ne.s32.totalorder %s54, %s70
      %p72 = scmp.eq.s32.totalorder %s20, 0
      %p73 = por %p71, %p72
      %s74 = ssub.s32 %s14, %s21
      %p75 = scmp.eq.s32.totalorder %s74, 0
      %s77 = sadd.s32 %s76, 1
      %s78 = scalar_select %p75, %s76, %s77
      %p81 = pneg %p75
      %p82 = scmp.eq.s32.totalorder %s14, 1
      %p83 = por %p81, %p82
      %p84 = scmp.ne.s32.totalorder %s76, %s79
      %p85 = scmp.eq.s32.totalorder %s14, 0
      %p86 = por %p84, %p85
      %p87 = scmp.ne.s32.totalorder %s76, %s79
      %p88 = scmp.eq.s32.totalorder %s19, 1
      %p89 = por %p87, %p88
      %p90 = scmp.ne.s32.totalorder %s79, %s80
      %p91 = scmp.eq.s32.totalorder %s19, 0
      %p92 = por %p90, %p91
      %p93 = scmp.ne.s32.totalorder %s79, %s80
      %p94 = scmp.eq.s32.totalorder %s20, 1
      %p95 = por %p93, %p94
      %p97 = scmp.ne.s32.totalorder %s80, %s96
      %p98 = scmp.eq.s32.totalorder %s20, 0
      %p99 = por %p97, %p98
      %p100 = scmp.le.s32.totalorder 1, %s14
      %p101 = scmp.lt.s32.totalorder %s14, 3
      %p102 = pnand %p100, %p101
      %p103 = pneg %p102
      // Predicated region
      $region9: #{tpu_custom_call.1} parent=5 // pred_check
        _
      $region10: #{tpu_custom_call.1} parent=5 // pred_check_branch
        %105 = sbr.rel (%p102) target = $region12
      $region11: #{tpu_custom_call.1} parent=5 // pred_region
        %s106 = ssub.s32 %s14, 1
      $region12: #{tpu_custom_call.1} parent=5 // pred_fallthru
        _
      %p107 = scmp.lt.s32.totalorder %s14, 2
      // Predicated region
      $region13: #{tpu_custom_call.1} parent=5 // pred_check
        %p108 = pneg %p107
      $region14: #{tpu_custom_call.1} parent=5 // pred_check_branch
        %110 = sbr.rel (%p108) target = $region16
      $region15: #{tpu_custom_call.1} parent=5 // pred_region
        // Predicated region
        $region17: #{tpu_custom_call.1} parent=15 // pred_check
          %p111 = pneg %p34
        $region18: #{tpu_custom_call.1} parent=15 // pred_check_branch
          %113 = sbr.rel (%p111) target = $region20
        $region19: #{tpu_custom_call.1} parent=15 // pred_region
          %s114 = sand.u32 %s24, 1
          %s115 = scalar_lea.sflag [#allocation3], %s114
          %s116 = sand.u32 %s24, 1
          %s117 = smul.addr %s116, 64
          %s118 = scalar_lea.vmem [#allocation2], %s117
          %s119 = smul.u32 4, %s14
          %121 = vsyncadd %s115, 0
          %s122 = smul.addr %s119, 2
          %s123 = smul.addr %s122, 8
          %s124 = scalar_lea.hbm %s0, %s123
          %s125 = sshll.u32 %s124, 4
          %s126 = int_to_ptr.hbm [resolvable:$true] %s125
          %s127 = sshll.u32 %s118, 4
          %s128 = int_to_ptr.vmem [resolvable:$true] %s127
          %133 = dma.hbm_to_vmem [thread:$0]  %s126, 1024, %s128, %s115, 256, 256, 16
        $region20: #{tpu_custom_call.1} parent=15 // pred_fallthru
          _
        // Predicated region
        $region21: #{tpu_custom_call.1} parent=15 // pred_check
          %p134 = pneg %p60
        $region22: #{tpu_custom_call.1} parent=15 // pred_check_branch
          %136 = sbr.rel (%p134) target = $region24
        $region23: #{tpu_custom_call.1} parent=15 // pred_region
          %s137 = sand.u32 %s50, 1
          %s138 = scalar_lea.sflag [#allocation5], %s137
          %s139 = sand.u32 %s50, 1
          %s140 = smul.addr %s139, 16
          %s141 = scalar_lea.vmem [#allocation4], %s140
          %143 = vsyncadd %s138, 0
          %s144 = smul.addr %s14, 2
          %s145 = smul.addr %s144, 8
          %s146 = scalar_lea.hbm %s1, %s145
          %s148 = sshll.u32 %s146, 4
          %s149 = int_to_ptr.hbm [resolvable:$true] %s148
          %s150 = sshll.u32 %s141, 4
          %s151 = int_to_ptr.vmem [resolvable:$true] %s150
          %153 = dma.hbm_to_vmem [thread:$0]  %s149, 256, %s151, %s138
        $region24: #{tpu_custom_call.1} parent=15 // pred_fallthru
          _
      $region16: #{tpu_custom_call.1} parent=5 // pred_fallthru
        _
      %p154 = scmp.le.s32.totalorder 1, %s14
      %p155 = scmp.lt.s32.totalorder %s14, 3
      %p156 = pnand %p154, %p155
      %p157 = pneg %p156
      // Predicated region
      $region25: #{tpu_custom_call.1} parent=5 // pred_check
        _
      $region26: #{tpu_custom_call.1} parent=5 // pred_check_branch
        %159 = sbr.rel (%p156) target = $region28
      $region27: #{tpu_custom_call.1} parent=5 // pred_region
        %s160 = ssub.s32 %s14, 1
        %s161 = sand.u32 %s27, 1
        %s162 = scalar_lea.sflag [#allocation3], %s161
        %s163 = sand.u32 %s27, 1
        %s164 = smul.addr %s163, 64
        %s165 = scalar_lea.vmem [#allocation2], %s164
        // Predicated region
        $region29: #{tpu_custom_call.1} parent=27 // pred_check
          %p166 = pneg %p40
        $region30: #{tpu_custom_call.1} parent=27 // pred_check_branch
          %168 = sbr.rel (%p166) target = $region32
        $region31: #{tpu_custom_call.1} parent=27 // pred_region
          %170 = dma.done %s162, 1024
        $region32: #{tpu_custom_call.1} parent=27 // pred_fallthru
          _
        %s171 = sand.u32 %s53, 1
        %s172 = scalar_lea.sflag [#allocation5], %s171
        %s173 = sand.u32 %s53, 1
        %s174 = smul.addr %s173, 16
        %s175 = scalar_lea.vmem [#allocation4], %s174
        // Predicated region
        $region33: #{tpu_custom_call.1} parent=27 // pred_check
          %p176 = pneg %p66
        $region34: #{tpu_custom_call.1} parent=27 // pred_check_branch
          %178 = sbr.rel (%p176) target = $region36
        $region35: #{tpu_custom_call.1} parent=27 // pred_region
          %180 = dma.done %s172, 256
        $region36: #{tpu_custom_call.1} parent=27 // pred_fallthru
          _
        %s181 = sand.u32 %s27, 1
        %s182 = scalar_lea.sflag [#allocation3], %s181
        %s183 = sand.u32 %s27, 1
        %s184 = smul.addr %s183, 64
        %s185 = scalar_lea.vmem [#allocation2], %s184
        %p186 = pneg %p40
        %p187 = pneg %p37
        %s188 = sand.u32 %s53, 1
        %s189 = scalar_lea.sflag [#allocation5], %s188
        %s190 = sand.u32 %s53, 1
        %s191 = smul.addr %s190, 16
        %s192 = scalar_lea.vmem [#allocation4], %s191
        %p193 = pneg %p66
        %p194 = pneg %p63
        %p195 = pneg %p92
        %p196 = pneg %p89
        %s197 = smul.u32 4, %s19
        %p198 = scmp.lt.s32.totalorder %s197, 7
        %s199 = scalar_select %p198, %s197, 7
        %s200 = smul.addr %s199, 8
        %s201 = scalar_lea.vmem %s2, %s200
        %s202 = smul.u32 4, %s19
        %s203 = smul.u32 4, %s19
        %p204 = scmp.lt.s32.totalorder %s203, 7
        %s205 = scalar_select %p204, %s203, 7
        %s206 = smul.addr %s205, 8
        %s207 = scalar_lea.vmem %s2, %s206
        %s208 = smul.u32 4, %s19
        %v211 = vld [vmem:[%s165] sm:$0xff]
        %v212 = vld [vmem:[%s165 + $0x8] sm:$0xff]
        %v213 = vld [vmem:[%s165 + $0x10] sm:$0xff]
        %v214 = vld [vmem:[%s165 + $0x18] sm:$0xff]
        %v215 = vld [vmem:[%s165 + $0x20] sm:$0xff]
        %v216 = vld [vmem:[%s165 + $0x28] sm:$0xff]
        %v217 = vld [vmem:[%s165 + $0x30] sm:$0xff]
        %v218 = vld [vmem:[%s165 + $0x38] sm:$0xff]
        %v219 = vld [vmem:[%s175] sm:$0xff]
        %v220 = vld [vmem:[%s175 + $0x8] sm:$0xff]
        %v221 = vmax.f32 %v211, %v212
        %222 = vmax.xlane.f32.xlu0 %v221
        %v223 = vpop.xlane.xlu0 %222
        %v224 = vmax.f32 %v213, %v214
        %225 = vmax.xlane.f32.xlu0 %v224
        %v226 = vpop.xlane.xlu0 %225
        %v227 = vmax.f32 %v215, %v216
        %228 = vmax.xlane.f32.xlu0 %v227
        %v229 = vpop.xlane.xlu0 %228
        %v230 = vmax.f32 %v217, %v218
        %231 = vmax.xlane.f32.xlu0 %v230
        %v232 = vpop.xlane.xlu0 %231
        %v233 = vsub.f32 %v211, %v223
        %v234 = vsub.f32 %v212, %v223
        %v235 = vsub.f32 %v213, %v226
        %v236 = vsub.f32 %v214, %v226
        %v237 = vsub.f32 %v215, %v229
        %v238 = vsub.f32 %v216, %v229
        %v239 = vsub.f32 %v217, %v232
        %v240 = vsub.f32 %v218, %v232
        %v241 = vmul.f32 %v233, 1.442695
        %v242 = vpow.pop %v241
        %v243 = vmul.f32 %v234, 1.442695
        %v244 = vpow.pop %v243
        %v245 = vmul.f32 %v235, 1.442695
        %v246 = vpow.pop %v245
        %v247 = vmul.f32 %v236, 1.442695
        %v248 = vpow.pop %v247
        %v249 = vmul.f32 %v237, 1.442695
        %v250 = vpow.pop %v249
        %v251 = vmul.f32 %v238, 1.442695
        %v252 = vpow.pop %v251
        %v253 = vmul.f32 %v239, 1.442695
        %v254 = vpow.pop %v253
        %v255 = vmul.f32 %v240, 1.442695
        %v256 = vpow.pop %v255
        %v257 = vadd.f32 %v242, %v244
        %258 = vadd.xlane.f32.xlu0 %v257
        %v259 = vpop.xlane.xlu0 %258
        %v260 = vadd.f32 %v246, %v248
        %261 = vadd.xlane.f32.xlu0 %v260
        %v262 = vpop.xlane.xlu0 %261
        %v263 = vadd.f32 %v250, %v252
        %264 = vadd.xlane.f32.xlu0 %v263
        %v265 = vpop.xlane.xlu0 %264
        %v266 = vadd.f32 %v254, %v256
        %267 = vadd.xlane.f32.xlu0 %v266
        %v268 = vpop.xlane.xlu0 %267
        %vm269 = vnez %v219
        %vm270 = vnez %v220
        %v271 = vsel %vm269, 16843009, 0
        %v272 = vsel %vm270, 16843009, 0
        %v273 = vunpack.c.0.s8 %v271
        %v274 = vunpack.c.0.s8 %v272
        %v275 = vunpack.c.1.s8 %v271
        %v276 = vunpack.c.1.s8 %v272
        %v277 = vunpack.c.2.s8 %v271
        %v278 = vunpack.c.2.s8 %v272
        %v279 = vunpack.c.3.s8 %v271
        %v280 = vunpack.c.3.s8 %v272
        %v281 = vpack.c.b16 %v274, %v273
        %v282 = vpack.c.b8 %v281, %v281
        %v283 = vpack.c.b16 %v276, %v275
        %v284 = vpack.c.b8 %v283, %v283
        %v285 = vpack.c.b16 %v278, %v277
        %v286 = vpack.c.b8 %v285, %v285
        %v287 = vpack.c.b16 %v280, %v279
        %v288 = vpack.c.b8 %v287, %v287
        %vm289 = vnez %v282
        %vm290 = vnez %v284
        %vm291 = vnez %v286
        %vm292 = vnez %v288
        %v293 = vsel %vm289, 16843009, 0
        %v294 = vsel %vm290, 16843009, 0
        %v295 = vsel %vm291, 16843009, 0
        %v296 = vsel %vm292, 16843009, 0
        %v297 = vunpack.c.0.s8 %v293
        %v298 = vunpack.c.1.s8 %v293
        %v299 = vunpack.c.0.s8 %v294
        %v300 = vunpack.c.1.s8 %v294
        %v301 = vunpack.c.0.s8 %v295
        %v302 = vunpack.c.1.s8 %v295
        %v303 = vunpack.c.0.s8 %v296
        %v304 = vunpack.c.1.s8 %v296
        %vm305 = vcmp.ne.s32.totalorder %v297, 0
        %vm306 = vcmp.ne.s32.totalorder %v298, 0
        %vm307 = vcmp.ne.s32.totalorder %v299, 0
        %vm308 = vcmp.ne.s32.totalorder %v300, 0
        %vm309 = vcmp.ne.s32.totalorder %v301, 0
        %vm310 = vcmp.ne.s32.totalorder %v302, 0
        %vm311 = vcmp.ne.s32.totalorder %v303, 0
        %vm312 = vcmp.ne.s32.totalorder %v304, 0
        %v313 = vsel %vm305, %v242, 0.0
        %v314 = vsel %vm306, %v244, 0.0
        %v315 = vsel %vm307, %v246, 0.0
        %v316 = vsel %vm308, %v248, 0.0
        %v317 = vsel %vm309, %v250, 0.0
        %v318 = vsel %vm310, %v252, 0.0
        %v319 = vsel %vm311, %v254, 0.0
        %v320 = vsel %vm312, %v256, 0.0
        %v321 = vadd.f32 %v313, %v314
        %322 = vadd.xlane.f32.xlu0 %v321
        %v323 = vpop.xlane.xlu0 %322
        %v324 = vadd.f32 %v315, %v316
        %325 = vadd.xlane.f32.xlu0 %v324
        %v326 = vpop.xlane.xlu0 %325
        %v327 = vadd.f32 %v317, %v318
        %328 = vadd.xlane.f32.xlu0 %v327
        %v329 = vpop.xlane.xlu0 %328
        %v330 = vadd.f32 %v319, %v320
        %331 = vadd.xlane.f32.xlu0 %v330
        %v332 = vpop.xlane.xlu0 %331
        %v333 = vlog2.pop %v259
        %v334 = vmul.f32 %v333, 0.6931472
        %v335 = vlog2.pop %v262
        %v336 = vmul.f32 %v335, 0.6931472
        %v337 = vlog2.pop %v265
        %v338 = vmul.f32 %v337, 0.6931472
        %v339 = vlog2.pop %v268
        %v340 = vmul.f32 %v339, 0.6931472
        %v341 = vlog2.pop %v323
        %v342 = vmul.f32 %v341, 0.6931472
        %v343 = vlog2.pop %v326
        %v344 = vmul.f32 %v343, 0.6931472
        %v345 = vlog2.pop %v329
        %v346 = vmul.f32 %v345, 0.6931472
        %v347 = vlog2.pop %v332
        %v348 = vmul.f32 %v347, 0.6931472
        %v349 = vsub.f32 %v334, %v342
        %v350 = vsub.f32 %v336, %v344
        %v351 = vsub.f32 %v338, %v346
        %v352 = vsub.f32 %v340, %v348
        %vm353 = vcmask 7168
        %354 = vst.msk [vmem:[%s207] sm:$0xff] %vm353, %v349
        %355 = vst.msk [vmem:[%s207 + $0x8] sm:$0xff] %vm353, %v350
        %356 = vst.msk [vmem:[%s207 + $0x10] sm:$0xff] %vm353, %v351
        %357 = vst.msk [vmem:[%s207 + $0x18] sm:$0xff] %vm353, %v352
        %s358 = smul.u32 4, %s19
        %p359 = scmp.lt.s32.totalorder %s358, 7
        %s360 = scalar_select %p359, %s358, 7
        %s361 = smul.addr %s360, 8
        %s362 = scalar_lea.vmem %s2, %s361
        // Predicated region
        $region37: #{tpu_custom_call.1} parent=27 // pred_check
          %p363 = pneg %p89
        $region38: #{tpu_custom_call.1} parent=27 // pred_check_branch
          %365 = sbr.rel (%p363) target = $region40
        $region39: #{tpu_custom_call.1} parent=27 // pred_region
          %s366 = smul.u32 4, %s19
        $region40: #{tpu_custom_call.1} parent=27 // pred_fallthru
          _
      $region28: #{tpu_custom_call.1} parent=5 // pred_fallthru
        _
      %p367 = scmp.le.s32.totalorder 2, %s14
      // Predicated region
      $region41: #{tpu_custom_call.1} parent=5 // pred_check
        %p368 = pneg %p367
      $region42: #{tpu_custom_call.1} parent=5 // pred_check_branch
        %370 = sbr.rel (%p368) target = $region44
      $region43: #{tpu_custom_call.1} parent=5 // pred_region
        %s371 = ssub.s32 %s14, 2
        // Predicated region
        $region45: #{tpu_custom_call.1} parent=43 // pred_check
          %p372 = pneg %p95
        $region46: #{tpu_custom_call.1} parent=43 // pred_check_branch
          %374 = sbr.rel (%p372) target = $region48
        $region47: #{tpu_custom_call.1} parent=43 // pred_region
          %s375 = smul.u32 4, %s20
          %p376 = scmp.lt.s32.totalorder %s375, 7
          %s377 = scalar_select %p376, %s375, 7
          %s378 = smul.addr %s377, 8
          %s379 = scalar_lea.vmem %s2, %s378
        $region48: #{tpu_custom_call.1} parent=43 // pred_fallthru
          _
      $region44: #{tpu_custom_call.1} parent=5 // pred_fallthru
        _
    $region6: #{tpu_custom_call.1} parent=1 // loop_footer
      %s18 = sadd.s32 1, %s14
    $region7: #{tpu_custom_call.1} parent=1 // loop_footer_branch
      %13 = sbr.rel target = $region3
    $region8: #{tpu_custom_call.1} parent=1 // loop_exit
      _
    %380 = vsyncpa [#allocation3], 1
    %s381 = scalar_lea.sflag [#allocation3], 1
    %382 = vsyncpa %s381, 1
    %383 = vsyncpa [#allocation5], 1
    %s384 = scalar_lea.sflag [#allocation5], 1
    %385 = vsyncpa %s384, 1

</llo_original>
